<compile_context>
chip_gen: v6e
topology: v6e:2x2x1
jax: 0.10.0
libtpu: 0.0.40
codegen_flags: <defaults>
</compile_context>

<pallas_src>
import functools

import jax
import jax.numpy as jnp
from jax import lax
from jax.experimental import pallas as pl
from jax.experimental.pallas import tpu as pltpu


def _yolo_decode_kernel(anchors_smem, grid_ref, x_ref, o_ref, *, A, stride_y, stride_x):
    # anchors_smem : SMEM (2*A,) float32   (scalar-prefetched, flat [w0,h0,w1,h1,...])
    # grid_ref     : VMEM (2, HW) float32  (row 0 = gx, row 1 = gy), shared by all steps
    # x_ref, o_ref : VMEM (attrs, HW) float32 -- lane-dense (HW on the lane axis)
    a = pl.program_id(0) % A          # grid axis is fused b*A + a (row-major)

    aw = anchors_smem[2 * a]
    ah = anchors_smem[2 * a + 1]

    x = x_ref[...]                    # single full-tile load
    s = jax.nn.sigmoid(x)             # one wide VPU/EUP pass over the whole tile
    o_ref[...] = s                    # full-tile lane-dense store

    # Fix up the 4 box rows.
    gx = grid_ref[0:1, :]
    gy = grid_ref[1:2, :]
    o_ref[0:1, :] = (s[0:1, :] + gx) * jnp.float32(stride_x)
    o_ref[1:2, :] = (s[1:2, :] + gy) * jnp.float32(stride_y)
    o_ref[2:3, :] = jnp.exp(x[2:3, :]) * aw
    o_ref[3:4, :] = jnp.exp(x[3:4, :]) * ah


def yolo_detection(x, anchors, inp_dim):
    """x: (B, A*attrs, H, W) float32; anchors: (A, 2) float32; inp_dim: (Hin, Win)."""
    B, C, H, W = x.shape
    A = anchors.shape[0]
    attrs = C // A
    HW = H * W
    stride_y = inp_dim[0] // H
    stride_x = inp_dim[1] // W

    # Lane-dense layout: (B*A, attrs, H*W); one (attrs, HW) tile per grid step.
    xr = x.reshape(B * A, attrs, HW)

    # Flat 1-D anchors for SMEM (no (A,2)->(8,128) padding).
    anchors_flat = anchors.reshape(-1).astype(x.dtype)

    # Precomputed grid-cell offsets on the flattened lane axis: row0 = gx, row1 = gy.
    gx = jnp.tile(jnp.arange(W, dtype=x.dtype), H)              # (HW,)
    gy = jnp.repeat(jnp.arange(H, dtype=x.dtype), W)            # (HW,)
    grid_off = jnp.stack([gx, gy], axis=0)                      # (2, HW)

    kernel = functools.partial(
        _yolo_decode_kernel, A=A, stride_y=float(stride_y), stride_x=float(stride_x)
    )

    n_elems = B * C * H * W
    out = pl.pallas_call(
        kernel,
        out_shape=jax.ShapeDtypeStruct((B * A, attrs, HW), x.dtype),
        grid_spec=pltpu.PrefetchScalarGridSpec(
            num_scalar_prefetch=1,  # anchors_flat -> SMEM
            grid=(B * A,),
            in_specs=[
                # (2, HW) grid offsets: same block for every step.
                pl.BlockSpec((2, HW), lambda i, anc: (0, 0)),
                # one (attrs, HW) tile per fused (b, a) step; leading dim squeezed.
                pl.BlockSpec((None, attrs, HW), lambda i, anc: (i, 0, 0)),
            ],
            out_specs=pl.BlockSpec((None, attrs, HW), lambda i, anc: (i, 0, 0)),
        ),
        compiler_params=pltpu.CompilerParams(
            dimension_semantics=("parallel",),
        ),
        cost_estimate=pl.CostEstimate(
            flops=4 * n_elems,
            transcendentals=3 * n_elems,          # sigmoid (exp+recip) + exp rows
            bytes_accessed=2 * n_elems * x.dtype.itemsize,
        ),
    )(anchors_flat, grid_off, xr)

    return out.reshape(B, A, attrs, H, W)


def yolo_detection_ref(x, anchors, inp_dim):
    """Pure-JAX reference of the same decode."""
    B, C, H, W = x.shape
    A = anchors.shape[0]
    attrs = C // A
    sy = inp_dim[0] // H
    sx = inp_dim[1] // W
    xr = x.reshape(B, A, attrs, H, W)
    gy = jnp.arange(H, dtype=x.dtype).reshape(1, 1, H, 1)
    gx = jnp.arange(W, dtype=x.dtype).reshape(1, 1, 1, W)
    bx = (jax.nn.sigmoid(xr[:, :, 0]) + gx) * sx
    by = (jax.nn.sigmoid(xr[:, :, 1]) + gy) * sy
    bw = jnp.exp(xr[:, :, 2]) * anchors[:, 0].reshape(1, A, 1, 1)
    bh = jnp.exp(xr[:, :, 3]) * anchors[:, 1].reshape(1, A, 1, 1)
    rest = jax.nn.sigmoid(xr[:, :, 4:])
    boxes = jnp.stack([bx, by, bw, bh], axis=2)
    return jnp.concatenate([boxes, rest], axis=2)


if __name__ == "__main__":
    key = jax.random.PRNGKey(0)

    # Small, module-consistent shapes: A=3 anchors, attrs = 5 + 3 classes = 8.
    B, A, num_classes = 2, 3, 3
    attrs = 5 + num_classes                # 8
    H = W = 16                             # H*W = 256 -> lane-dense (2 x 128)
    C = A * attrs                          # 24
    inp_dim = (64, 64)                     # stride = (4, 4)

    # Deterministic "buffer" init (module registers anchors as a buffer).
    anchors = jnp.array(
        [[10.0, 13.0], [16.0, 30.0], [33.0, 23.0]], dtype=jnp.float32
    )

    x = jax.random.normal(key, (B, C, H, W), dtype=jnp.float32)

    out = yolo_detection(x, anchors, inp_dim)
    out = jax.block_until_ready(out)

    ref = yolo_detection_ref(x, anchors, inp_dim)
    assert out.shape == (B, A, attrs, H, W)
    assert jnp.allclose(out, ref, rtol=1e-5, atol=1e-5), "mismatch vs reference"

    print("KERNEL_OK")
</pallas_src>

<mosaic_0001>
module attributes {stable_mosaic.version = 11 : i64} {
  func.func @_yolo_decode_kernel(%arg0: i32, %arg1: memref<6xf32, #tpu.memory_space<smem>>, %arg2: memref<2x256xf32, #tpu.memory_space<vmem>>, %arg3: memref<1x8x256xf32, #tpu.memory_space<vmem>>, %arg4: memref<1x8x256xf32, #tpu.memory_space<vmem>>) attributes {dimension_semantics = [#tpu.dimension_semantics<parallel>], iteration_bounds = array<i64: 6>, scalar_prefetch = 1 : i64, scratch_operands = 0 : i64, tpu.core_type = #tpu.core_type<tc>, window_params = [{pipeline_mode = #tpu.pipeline_mode<synchronous>, transform_indices = @transform_0, window_bounds = array<i64: 2, 256>}, {transform_indices = @transform_1, window_bounds = array<i64: 1, 8, 256>}, {transform_indices = @transform_2, window_bounds = array<i64: 1, 8, 256>}]} {
    %c3_i32 = arith.constant 3 : i32
    %c0_i32 = arith.constant 0 : i32
    %0 = arith.cmpi eq, %c3_i32, %c0_i32 : i32
    %c1_i32 = arith.constant 1 : i32
    %1 = arith.select %0, %c1_i32, %c3_i32 : i32
    %2 = arith.remsi %arg0, %1 : i32
    %c0_i32_0 = arith.constant 0 : i32
    %3 = arith.cmpi ne, %2, %c0_i32_0 : i32
    %c0_i32_1 = arith.constant 0 : i32
    %4 = arith.cmpi slt, %2, %c0_i32_1 : i32
    %c0_i32_2 = arith.constant 0 : i32
    %5 = arith.cmpi slt, %1, %c0_i32_2 : i32
    %6 = arith.xori %4, %5 : i1
    %7 = arith.andi %6, %3 : i1
    %8 = arith.addi %2, %1 : i32
    %9 = arith.select %7, %8, %2 : i32
    %c2_i32 = arith.constant 2 : i32
    %10 = arith.muli %c2_i32, %9 : i32
    %11 = arith.index_cast %10 : i32 to index
    %12 = memref.load %arg1[%11] : memref<6xf32, #tpu.memory_space<smem>>
    %c2_i32_3 = arith.constant 2 : i32
    %13 = arith.muli %c2_i32_3, %9 : i32
    %c1_i32_4 = arith.constant 1 : i32
    %14 = arith.addi %13, %c1_i32_4 : i32
    %15 = arith.index_cast %14 : i32 to index
    %16 = memref.load %arg1[%15] : memref<6xf32, #tpu.memory_space<smem>>
    %c0 = arith.constant 0 : index
    %c0_5 = arith.constant 0 : index
    %c0_6 = arith.constant 0 : index
    %17 = vector.load %arg3[%c0, %c0_5, %c0_6] : memref<1x8x256xf32, #tpu.memory_space<vmem>>, vector<1x8x256xf32>
    %18 = vector.shape_cast %17 : vector<1x8x256xf32> to vector<8x256xf32>
    %19 = arith.negf %18 : vector<8x256xf32>
    %20 = math.exp %19 : vector<8x256xf32>
    %cst = arith.constant 1.000000e+00 : f32
    %21 = vector.broadcast %cst : f32 to vector<8x256xf32>
    %22 = arith.addf %21, %20 : vector<8x256xf32>
    %23 = arith.divf %21, %22 : vector<8x256xf32>
    %c0_7 = arith.constant 0 : index
    %c0_8 = arith.constant 0 : index
    %c0_9 = arith.constant 0 : index
    %24 = vector.load %arg4[%c0_7, %c0_8, %c0_9] : memref<1x8x256xf32, #tpu.memory_space<vmem>>, vector<1x8x256xf32>
    %25 = vector.shape_cast %24 : vector<1x8x256xf32> to vector<8x256xf32>
    %26 = vector.shape_cast %23 : vector<8x256xf32> to vector<1x8x256xf32>
    tpu.vector_store %arg4[%c0_7, %c0_8, %c0_9], %26 {strides = array<i32>} : memref<1x8x256xf32, #tpu.memory_space<vmem>>, vector<1x8x256xf32>,
    %c0_10 = arith.constant 0 : index
    %c0_11 = arith.constant 0 : index
    %27 = vector.load %arg2[%c0_10, %c0_11] : memref<2x256xf32, #tpu.memory_space<vmem>>, vector<1x256xf32>
    %c1 = arith.constant 1 : index
    %c0_12 = arith.constant 0 : index
    %28 = vector.load %arg2[%c1, %c0_12] : memref<2x256xf32, #tpu.memory_space<vmem>>, vector<1x256xf32>
    %29 = vector.extract_strided_slice %23 {offsets = [0, 0], sizes = [1, 256], strides = [1, 1]} : vector<8x256xf32> to vector<1x256xf32>
    %30 = arith.addf %29, %27 : vector<1x256xf32>
    %cst_13 = arith.constant 4.000000e+00 : f32
    %31 = vector.broadcast %cst_13 : f32 to vector<1x256xf32>
    %32 = arith.mulf %30, %31 : vector<1x256xf32>
    %c0_14 = arith.constant 0 : index
    %c0_15 = arith.constant 0 : index
    %c0_16 = arith.constant 0 : index
    %33 = vector.load %arg4[%c0_14, %c0_15, %c0_16] : memref<1x8x256xf32, #tpu.memory_space<vmem>>, vector<1x1x256xf32>
    %34 = vector.shape_cast %33 : vector<1x1x256xf32> to vector<1x256xf32>
    %35 = vector.shape_cast %32 : vector<1x256xf32> to vector<1x1x256xf32>
    tpu.vector_store %arg4[%c0_14, %c0_15, %c0_16], %35 {strides = array<i32>} : memref<1x8x256xf32, #tpu.memory_space<vmem>>, vector<1x1x256xf32>,
    %36 = vector.extract_strided_slice %23 {offsets = [1, 0], sizes = [1, 256], strides = [1, 1]} : vector<8x256xf32> to vector<1x256xf32>
    %37 = arith.addf %36, %28 : vector<1x256xf32>
    %cst_17 = arith.constant 4.000000e+00 : f32
    %38 = vector.broadcast %cst_17 : f32 to vector<1x256xf32>
    %39 = arith.mulf %37, %38 : vector<1x256xf32>
    %c0_18 = arith.constant 0 : index
    %c1_19 = arith.constant 1 : index
    %c0_20 = arith.constant 0 : index
    %40 = vector.load %arg4[%c0_18, %c1_19, %c0_20] : memref<1x8x256xf32, #tpu.memory_space<vmem>>, vector<1x1x256xf32>
    %41 = vector.shape_cast %40 : vector<1x1x256xf32> to vector<1x256xf32>
    %42 = vector.shape_cast %39 : vector<1x256xf32> to vector<1x1x256xf32>
    tpu.vector_store %arg4[%c0_18, %c1_19, %c0_20], %42 {strides = array<i32>} : memref<1x8x256xf32, #tpu.memory_space<vmem>>, vector<1x1x256xf32>,
    %43 = vector.extract_strided_slice %18 {offsets = [2, 0], sizes = [1, 256], strides = [1, 1]} : vector<8x256xf32> to vector<1x256xf32>
    %44 = math.exp %43 : vector<1x256xf32>
    %45 = vector.broadcast %12 : f32 to vector<1x256xf32>
    %46 = arith.mulf %44, %45 : vector<1x256xf32>
    %c0_21 = arith.constant 0 : index
    %c2 = arith.constant 2 : index
    %c0_22 = arith.constant 0 : index
    %47 = vector.load %arg4[%c0_21, %c2, %c0_22] : memref<1x8x256xf32, #tpu.memory_space<vmem>>, vector<1x1x256xf32>
    %48 = vector.shape_cast %47 : vector<1x1x256xf32> to vector<1x256xf32>
    %49 = vector.shape_cast %46 : vector<1x256xf32> to vector<1x1x256xf32>
    tpu.vector_store %arg4[%c0_21, %c2, %c0_22], %49 {strides = array<i32>} : memref<1x8x256xf32, #tpu.memory_space<vmem>>, vector<1x1x256xf32>,
    %50 = vector.extract_strided_slice %18 {offsets = [3, 0], sizes = [1, 256], strides = [1, 1]} : vector<8x256xf32> to vector<1x256xf32>
    %51 = math.exp %50 : vector<1x256xf32>
    %52 = vector.broadcast %16 : f32 to vector<1x256xf32>
    %53 = arith.mulf %51, %52 : vector<1x256xf32>
    %c0_23 = arith.constant 0 : index
    %c3 = arith.constant 3 : index
    %c0_24 = arith.constant 0 : index
    %54 = vector.load %arg4[%c0_23, %c3, %c0_24] : memref<1x8x256xf32, #tpu.memory_space<vmem>>, vector<1x1x256xf32>
    %55 = vector.shape_cast %54 : vector<1x1x256xf32> to vector<1x256xf32>
    %56 = vector.shape_cast %53 : vector<1x256xf32> to vector<1x1x256xf32>
    tpu.vector_store %arg4[%c0_23, %c3, %c0_24], %56 {strides = array<i32>} : memref<1x8x256xf32, #tpu.memory_space<vmem>>, vector<1x1x256xf32>,
    return
  }
  func.func @transform_0(%arg0: i32, %arg1: memref<6xf32, #tpu.memory_space<smem>>) -> (i32, i32) {
    %c0_i32 = arith.constant 0 : i32
    %c0_i32_0 = arith.constant 0 : i32
    %c0_i32_1 = arith.constant 0 : i32
    return %c0_i32, %c0_i32_0 : i32, i32
  }
  func.func @transform_1(%arg0: i32, %arg1: memref<6xf32, #tpu.memory_space<smem>>) -> (i32, i32, i32) {
    %c0_i32 = arith.constant 0 : i32
    %c0_i32_0 = arith.constant 0 : i32
    %c0_i32_1 = arith.constant 0 : i32
    return %arg0, %c0_i32, %c0_i32_0 : i32, i32, i32
  }
  func.func @transform_2(%arg0: i32, %arg1: memref<6xf32, #tpu.memory_space<smem>>) -> (i32, i32, i32) {
    %c0_i32 = arith.constant 0 : i32
    %c0_i32_0 = arith.constant 0 : i32
    %c0_i32_1 = arith.constant 0 : i32
    return %arg0, %c0_i32, %c0_i32_0 : i32, i32, i32
  }
}

</mosaic_0001>

<llo_original>
// kernel: tpu_custom_call.1
$region0: #{tpu_custom_call.1}
  #allocation0 [shape = 'u32[]', space=smem, size = 0x4, offset = 0x4, fixed_abs, tag = 'smem constant byte address 0x4 - core index']
  #allocation1 [shape = 'u32[144,128]{1,0:T(1,128)}', space=vmem, size = 0x12000, scoped, tag = 'internal scratch']
  #allocation2 [shape = 's32[1]{0}', space=sflag, size = 0x4, scoped, tag = 'scoped memory for tpu_custom_call.1']
  #allocation3 [shape = 'u8[512]{0}', space=smem, size = 0x200, scoped, tag = 'prefetched SMEM operand 0']
  %s0 = inlined_call_operand.hbm [shape: f32[6], index: 0, kind: input, shape index: {}]
  %s1 = inlined_call_operand.hbm [shape: f32[2,256], index: 1, kind: input, shape index: {}]
  %s2 = inlined_call_operand.hbm [shape: f32[6,8,256], index: 2, kind: input, shape index: {}]
  %s3 = inlined_call_operand.hbm [shape: f32[6,8,256], index: 3, kind: output, shape index: {}]
  %s4 = sld [smem:[#allocation0]]
  $region49: #{tpu_custom_call.1} parent=0
    _
  %s6 = ssub.s32 1, %s4
  %s7 = scalar_select 0, %s6, %s4
  %9 = dma.hbm_to_smem %s0, 16, [#allocation3], [#allocation2]
  %10 = dma.done [#allocation2], 16
  %11 = sfence
  $region1: #{tpu_custom_call.1} parent=0
    #allocation4 [shape = 'u8[2048]{0}', space=vmem, size = 0x800, scoped, tag = 'input window, operand 1, single buffered']
    #allocation5 [shape = 's32[2]{0}', space=sflag, size = 0x8, scoped, tag = 'scoped memory for tpu_custom_call.1']
    #allocation6 [shape = 's32[2]{0}', space=sflag, size = 0x8, scoped, tag = 'scoped memory for tpu_custom_call.1']
    #allocation7 [shape = 'u8[16384]{0}', space=vmem, size = 0x4000, scoped, tag = 'input window, operand 2']
    #allocation8 [shape = 's32[2]{0}', space=sflag, size = 0x8, scoped, tag = 'scoped memory for tpu_custom_call.1']
    #allocation9 [shape = 'u8[16384]{0}', space=vmem, size = 0x4000, scoped, tag = 'output window, operand 0']
    %12 = vsyncpa [#allocation5], 0
    %13 = vsyncpa [#allocation8], 0
    %s14 = scalar_lea.sflag [#allocation8], 1
    %15 = vsyncpa %s14, 0
    %16 = vsyncpa [#allocation6], 0
    %s17 = scalar_lea.sflag [#allocation6], 1
    %18 = vsyncpa %s17, 0
    loop: start=0, step=1, limit=8
    $region2: #{tpu_custom_call.1} parent=1 // loop_pre_header
      _
    $region3: #{tpu_custom_call.1} parent=1 // loop_header
      %s20 = sphi 0, %s24
      %p21 = scmp.ge.s32.totalorder %s20, 8
      %s28 = sphi 0, %s28
      %s30 = sphi 0, %s28
      %s31 = sphi 0, %s30
      %s45 = sphi 0, %s31
      %s51 = sphi 0, %s53
      %s54 = sphi 0, %s51
      %s55 = sphi 0, %s54
      %s71 = sphi 0, %s55
      %s77 = sphi 0, %s79
      %s80 = sphi 0, %s77
      %s81 = sphi 0, %s80
      %s97 = sphi 0, %s81
    $region4: #{tpu_custom_call.1} parent=1 // loop_header_branch
      %23 = sbr.rel (%p21) target = $region8
    $region5: #{tpu_custom_call.1} parent=1 // loop_body
      %s25 = ssub.s32 %s20, 1
      %s26 = ssub.s32 %s20, 2
      %s27 = sadd.s32 %s20, 1
      %s29 = sadd.s32 %s28, 1
      %p32 = scmp.eq.s32.totalorder %s20, 5
      %p33 = scmp.ne.s32.totalorder %s28, %s30
      %p34 = scmp.eq.s32.totalorder %s20, 0
      %p35 = por %p33, %p34
      %p36 = scmp.ne.s32.totalorder %s28, %s30
      %p37 = scmp.eq.s32.totalorder %s25, 5
      %p38 = por %p36, %p37
      %p39 = scmp.ne.s32.totalorder %s30, %s31
      %p40 = scmp.eq.s32.totalorder %s25, 0
      %p41 = por %p39, %p40
      %p42 = scmp.ne.s32.totalorder %s30, %s31
      %p43 = scmp.eq.s32.totalorder %s26, 5
      %p44 = por %p42, %p43
      %p46 = scmp.ne.s32.totalorder %s31, %s45
      %p47 = scmp.eq.s32.totalorder %s26, 0
      %p48 = por %p46, %p47
      %s49 = ssub.s32 %s20, %s27
      %p50 = scmp.eq.s32.totalorder %s49, 0
      %s52 = sadd.s32 %s51, 1
      %s53 = scalar_select %p50, %s51, %s52
      %p56 = pneg %p50
      %p57 = scmp.eq.s32.totalorder %s20, 5
      %p58 = por %p56, %p57
      %p59 = scmp.ne.s32.totalorder %s51, %s54
      %p60 = scmp.eq.s32.totalorder %s20, 0
      %p61 = por %p59, %p60
      %p62 = scmp.ne.s32.totalorder %s51, %s54
      %p63 = scmp.eq.s32.totalorder %s25, 5
      %p64 = por %p62, %p63
      %p65 = scmp.ne.s32.totalorder %s54, %s55
      %p66 = scmp.eq.s32.totalorder %s25, 0
      %p67 = por %p65, %p66
      %p68 = scmp.ne.s32.totalorder %s54, %s55
      %p69 = scmp.eq.s32.totalorder %s26, 5
      %p70 = por %p68, %p69
      %p72 = scmp.ne.s32.totalorder %s55, %s71
      %p73 = scmp.eq.s32.totalorder %s26, 0
      %p74 = por %p72, %p73
      %s75 = ssub.s32 %s20, %s27
      %p76 = scmp.eq.s32.totalorder %s75, 0
      %s78 = sadd.s32 %s77, 1
      %s79 = scalar_select %p76, %s77, %s78
      %p82 = pneg %p76
      %p83 = scmp.eq.s32.totalorder %s20, 5
      %p84 = por %p82, %p83
      %p85 = scmp.ne.s32.totalorder %s77, %s80
      %p86 = scmp.eq.s32.totalorder %s20, 0
      %p87 = por %p85, %p86
      %p88 = scmp.ne.s32.totalorder %s77, %s80
      %p89 = scmp.eq.s32.totalorder %s25, 5
      %p90 = por %p88, %p89
      %p91 = scmp.ne.s32.totalorder %s80, %s81
      %p92 = scmp.eq.s32.totalorder %s25, 0
      %p93 = por %p91, %p92
      %p94 = scmp.ne.s32.totalorder %s80, %s81
      %p95 = scmp.eq.s32.totalorder %s26, 5
      %p96 = por %p94, %p95
      %p98 = scmp.ne.s32.totalorder %s81, %s97
      %p99 = scmp.eq.s32.totalorder %s26, 0
      %p100 = por %p98, %p99
      %p101 = scmp.le.s32.totalorder 1, %s20
      %p102 = scmp.lt.s32.totalorder %s20, 7
      %p103 = pnand %p101, %p102
      %p104 = pneg %p103
      // Predicated region
      $region9: #{tpu_custom_call.1} parent=5 // pred_check
        _
      $region10: #{tpu_custom_call.1} parent=5 // pred_check_branch
        %106 = sbr.rel (%p103) target = $region12
      $region11: #{tpu_custom_call.1} parent=5 // pred_region
        %s107 = ssub.s32 %s20, 1
        // Predicated region
        $region13: #{tpu_custom_call.1} parent=11 // pred_check
          %p108 = pneg %p41
        $region14: #{tpu_custom_call.1} parent=11 // pred_check_branch
          %110 = sbr.rel (%p108) target = $region16
        $region15: #{tpu_custom_call.1} parent=11 // pred_region
          %s112 = ssub.s32 64, 64
          %113 = vsyncadd [#allocation5], %s112
          %s115 = sshll.u32 [#allocation4], 4
          %s116 = int_to_ptr.vmem [resolvable:$true] %s115
          %118 = dma.hbm_to_vmem [thread:$0]  %s1, 64, %s116, [#allocation5]
        $region16: #{tpu_custom_call.1} parent=11 // pred_fallthru
          _
      $region12: #{tpu_custom_call.1} parent=5 // pred_fallthru
        _
      %p119 = scmp.lt.s32.totalorder %s20, 6
      // Predicated region
      $region17: #{tpu_custom_call.1} parent=5 // pred_check
        %p120 = pneg %p119
      $region18: #{tpu_custom_call.1} parent=5 // pred_check_branch
        %122 = sbr.rel (%p120) target = $region20
      $region19: #{tpu_custom_call.1} parent=5 // pred_region
        // Predicated region
        $region21: #{tpu_custom_call.1} parent=19 // pred_check
          %p123 = pneg %p61
        $region22: #{tpu_custom_call.1} parent=19 // pred_check_branch
          %125 = sbr.rel (%p123) target = $region24
        $region23: #{tpu_custom_call.1} parent=19 // pred_region
          %s126 = sand.u32 %s51, 1
          %s127 = scalar_lea.sflag [#allocation8], %s126
          %s128 = sand.u32 %s51, 1
          %s129 = smul.addr %s128, 16
          %s130 = scalar_lea.vmem [#allocation7], %s129
          %s132 = ssub.s32 256, 256
          %133 = vsyncadd %s127, %s132
          %s134 = smul.addr %s20, 2
          %s135 = smul.addr %s134, 128
          %s136 = scalar_lea.hbm %s2, %s135
          %s138 = sshll.u32 %s130, 4
          %s139 = int_to_ptr.vmem [resolvable:$true] %s138
          %141 = dma.hbm_to_vmem [thread:$0]  %s136, 256, %s139, %s127
        $region24: #{tpu_custom_call.1} parent=19 // pred_fallthru
          _
      $region20: #{tpu_custom_call.1} parent=5 // pred_fallthru
        _
      %p142 = scmp.le.s32.totalorder 1, %s20
      %p143 = scmp.lt.s32.totalorder %s20, 7
      %p144 = pnand %p142, %p143
      %p145 = pneg %p144
      // Predicated region
      $region25: #{tpu_custom_call.1} parent=5 // pred_check
        _
      $region26: #{tpu_custom_call.1} parent=5 // pred_check_branch
        %147 = sbr.rel (%p144) target = $region28
      $region27: #{tpu_custom_call.1} parent=5 // pred_region
        %s148 = ssub.s32 %s20, 1
        // Predicated region
        $region29: #{tpu_custom_call.1} parent=27 // pred_check
          %p149 = pneg %p41
        $region30: #{tpu_custom_call.1} parent=27 // pred_check_branch
          %151 = sbr.rel (%p149) target = $region32
        $region31: #{tpu_custom_call.1} parent=27 // pred_region
          %152 = dma.done [#allocation5], 64
        $region32: #{tpu_custom_call.1} parent=27 // pred_fallthru
          _
        %s153 = sand.u32 %s54, 1
        %s154 = scalar_lea.sflag [#allocation8], %s153
        %s155 = sand.u32 %s54, 1
        %s156 = smul.addr %s155, 16
        %s157 = scalar_lea.vmem [#allocation7], %s156
        // Predicated region
        $region33: #{tpu_custom_call.1} parent=27 // pred_check
          %p158 = pneg %p67
        $region34: #{tpu_custom_call.1} parent=27 // pred_check_branch
          %160 = sbr.rel (%p158) target = $region36
        $region35: #{tpu_custom_call.1} parent=27 // pred_region
          %161 = dma.done %s154, 256
        $region36: #{tpu_custom_call.1} parent=27 // pred_fallthru
          _
        %p162 = pneg %p41
        %p163 = pneg %p38
        %s164 = sand.u32 %s54, 1
        %s165 = scalar_lea.sflag [#allocation8], %s164
        %s166 = sand.u32 %s54, 1
        %s167 = smul.addr %s166, 16
        %s168 = scalar_lea.vmem [#allocation7], %s167
        %p169 = pneg %p67
        %p170 = pneg %p64
        %p171 = pneg %p93
        %p172 = pneg %p90
        %s173 = sand.u32 %s80, 1
        %s174 = scalar_lea.sflag [#allocation6], %s173
        %s175 = sand.u32 %s80, 1
        %s176 = smul.addr %s175, 16
        %s177 = scalar_lea.vmem [#allocation9], %s176
        %p178 = scmp.lt.s32.totalorder %s25, 0
        %s179 = ssub.s32 0, %s25
        %s180 = scalar_select %p178, %s179, %s25
        %s181 = sdiv.u32.pop %s180, 3
        %s182 = srem.u32.pop %s180, 3
        %s183 = ssub.s32 0, %s182
        %s184 = scalar_select %p178, %s183, %s182
        %p185 = scmp.ne.s32.totalorder %s184, 0
        %p186 = scmp.lt.s32.totalorder %s184, 0
        %p187 = pnand %p186, %p185
        %p188 = pneg %p187
        %s189 = sadd.s32 %s184, 3
        %s190 = scalar_select %p188, %s189, %s184
        %s191 = smul.u32 %s190, 2
        %s192 = sld [smem:[#allocation3 + %s191]]
        %s193 = sadd.s32 %s191, 1
        %s194 = sld [smem:[#allocation3 + %s193]]
        %v195 = vld [vmem:[%s157] sm:$0xff]
        %v196 = vld [vmem:[%s157 + $0x8] sm:$0xff]
        %v197 = vxor.u32 %v195, 2147483648
        %v198 = vxor.u32 %v196, 2147483648
        %v199 = vmul.f32 %v197, 1.442695
        %v200 = vpow.pop %v199
        %v201 = vmul.f32 %v198, 1.442695
        %v202 = vpow.pop %v201
        %v203 = vadd.f32 %v200, 1.0
        %v204 = vadd.f32 %v202, 1.0
        %v205 = vrcp.pop %v203
        %v206 = vmul.f32 1.0, %v205
        %v207 = vrcp.pop %v204
        %v208 = vmul.f32 1.0, %v207
        %209 = vst [vmem:[%s177] sm:$0xff] %v206
        %210 = vst [vmem:[%s177 + $0x8] sm:$0xff] %v208
        %v211 = vld [vmem:[#allocation4] ss:$2 sm:$0x3]
        %s212 = scalar_lea.vmem [#allocation4], 1
        %v213 = vld [vmem:[%s212] ss:$2 sm:$0x3]
        %v215 = vlaneseq
        %v216 = vshrl.u32 %v215, 7
        %v217 = vsub.s32 0, %v216
        %v218 = vrot.slane %v211, %v217
        %v219 = vlaneseq
        %v220 = vshrl.u32 %v219, 7
        %v221 = vsub.s32 1, %v220
        %v222 = vrot.slane %v211, %v221
        %v225 = vadd.f32 %v206, %v218
        %v226 = vadd.f32 %v208, %v222
        %v227 = vmul.f32 %v225, 4.0
        %v228 = vmul.f32 %v226, 4.0
        %v231 = vcombine.low %v227, %v228
        %v233 = vunpack.c.l.s4 1966171168
        %v234 = vunpack.c.0.s8 %v233
        %v235 = vlaneseq
        %v236 = vshrl.u32 %v235, 7
        %v237 = vsub.s32 %v234, %v236
        %v238 = vrot.slane %v231, %v237
        %v240 = vunpack.c.l.s4 1966171168
        %v241 = vunpack.c.0.s8 %v240
        %v242 = vlaneseq
        %v243 = vshrl.u32 %v242, 7
        %v244 = vsub.s32 %v241, %v243
        %v245 = vrot.slane %v238, %v244
        %v247 = vlaneseq
        %vm248 = vcmp.ge.s32.totalorder %v247, 0
        %vm249 = vcmp.lt.s32.totalorder %v247, 256
        %vm250 = vmand %vm248, %vm249
        %251 = vst.msk [vmem:[%s177] ss:$8 sm:$0x3] %vm250, %v245
        %252 = vst.msk [vmem:[%s177] ss:$8 sm:$0x0] %vm250, %v245
        %v254 = vlaneseq
        %v255 = vshrl.u32 %v254, 7
        %v256 = vsub.s32 0, %v255
        %v257 = vrot.slane %v213, %v256
        %v258 = vlaneseq
        %v259 = vshrl.u32 %v258, 7
        %v260 = vsub.s32 1, %v259
        %v261 = vrot.slane %v213, %v260
        %v264 = vadd.f32 %v206, %v257
        %v265 = vadd.f32 %v208, %v261
        %v266 = vmul.f32 %v264, 4.0
        %v267 = vmul.f32 %v265, 4.0
        %v270 = vcombine.low %v266, %v267
        %v272 = vunpack.c.l.s4 1966171168
        %v273 = vunpack.c.0.s8 %v272
        %v274 = vlaneseq
        %v275 = vshrl.u32 %v274, 7
        %v276 = vsub.s32 %v273, %v275
        %v277 = vrot.slane %v270, %v276
        %v278 = vcombine.high %v277, %v277
        %v280 = vunpack.c.l.s4 1966171168
        %v281 = vunpack.c.0.s8 %v280
        %v282 = vlaneseq
        %v283 = vshrl.u32 %v282, 7
        %v284 = vsub.s32 %v281, %v283
        %v285 = vrot.slane %v278, %v284
        %s287 = scalar_lea.vmem %s177, 1 [#allocation9]
        %288 = vst.msk [vmem:[%s287] ss:$8 sm:$0x3] %vm250, %v285
        %289 = vst.msk [vmem:[%s287] ss:$8 sm:$0x0] %vm250, %v285
        %v290 = vmul.f32 %v195, 1.442695
        %v291 = vpow.pop %v290
        %v292 = vmul.f32 %v196, 1.442695
        %v293 = vpow.pop %v292
        %v294 = vstv %s192
        %v295 = vmul.f32 %v291, %v294
        %v296 = vmul.f32 %v293, %v294
        %v299 = vcombine.low %v295, %v296
        %v301 = vunpack.c.l.s4 1966171168
        %v302 = vunpack.c.0.s8 %v301
        %v303 = vlaneseq
        %v304 = vshrl.u32 %v303, 7
        %v305 = vsub.s32 %v302, %v304
        %v306 = vrot.slane %v299, %v305
        %v308 = vunpack.c.l.s4 1966171168
        %v309 = vunpack.c.0.s8 %v308
        %v310 = vlaneseq
        %v311 = vshrl.u32 %v310, 7
        %v312 = vsub.s32 %v309, %v311
        %v313 = vrot.slane %v306, %v312
        %v314 = vcombine.high %v313, %v313
        %s316 = scalar_lea.vmem %s177, 2 [#allocation9]
        %317 = vst.msk [vmem:[%s316] ss:$8 sm:$0x3] %vm250, %v314
        %318 = vst.msk [vmem:[%s316] ss:$8 sm:$0x0] %vm250, %v314
        %v319 = vstv %s194
        %v320 = vmul.f32 %v291, %v319
        %v321 = vmul.f32 %v293, %v319
        %v324 = vcombine.low %v320, %v321
        %v326 = vunpack.c.l.s4 1966171168
        %v327 = vunpack.c.0.s8 %v326
        %v328 = vlaneseq
        %v329 = vshrl.u32 %v328, 7
        %v330 = vsub.s32 %v327, %v329
        %v331 = vrot.slane %v324, %v330
        %v332 = vcombine.high %v331, %v331
        %v334 = vunpack.c.l.s4 1966171168
        %v335 = vunpack.c.0.s8 %v334
        %v336 = vlaneseq
        %v337 = vshrl.u32 %v336, 7
        %v338 = vsub.s32 %v335, %v337
        %v339 = vrot.slane %v332, %v338
        %v340 = vcombine.high %v339, %v339
        %s342 = scalar_lea.vmem %s177, 3 [#allocation9]
        %343 = vst.msk [vmem:[%s342] ss:$8 sm:$0x3] %vm250, %v340
        %344 = vst.msk [vmem:[%s342] ss:$8 sm:$0x0] %vm250, %v340
        %s345 = sand.u32 %s80, 1
        %s346 = scalar_lea.sflag [#allocation6], %s345
        %s347 = sand.u32 %s80, 1
        %s348 = smul.addr %s347, 16
        %s349 = scalar_lea.vmem [#allocation9], %s348
        // Predicated region
        $region37: #{tpu_custom_call.1} parent=27 // pred_check
          %p350 = pneg %p90
        $region38: #{tpu_custom_call.1} parent=27 // pred_check_branch
          %352 = sbr.rel (%p350) target = $region40
        $region39: #{tpu_custom_call.1} parent=27 // pred_region
          %s354 = ssub.s32 256, 256
          %355 = vsyncadd %s346, %s354
          %s356 = smul.addr %s25, 2
          %s357 = smul.addr %s356, 128
          %s358 = scalar_lea.hbm %s3, %s357
          %s360 = sshll.u32 %s349, 4
          %s361 = int_to_ptr.vmem [resolvable:$true] %s360
          %363 = dma.vmem_to_hbm [thread:$0]  %s361, 256, %s358, %s346
        $region40: #{tpu_custom_call.1} parent=27 // pred_fallthru
          _
      $region28: #{tpu_custom_call.1} parent=5 // pred_fallthru
        _
      %p364 = scmp.le.s32.totalorder 2, %s20
      // Predicated region
      $region41: #{tpu_custom_call.1} parent=5 // pred_check
        %p365 = pneg %p364
      $region42: #{tpu_custom_call.1} parent=5 // pred_check_branch
        %367 = sbr.rel (%p365) target = $region44
      $region43: #{tpu_custom_call.1} parent=5 // pred_region
        %s368 = ssub.s32 %s20, 2
        // Predicated region
        $region45: #{tpu_custom_call.1} parent=43 // pred_check
          %p369 = pneg %p96
        $region46: #{tpu_custom_call.1} parent=43 // pred_check_branch
          %371 = sbr.rel (%p369) target = $region48
        $region47: #{tpu_custom_call.1} parent=43 // pred_region
          %s372 = sand.u32 %s81, 1
          %s373 = scalar_lea.sflag [#allocation6], %s372
          %s374 = sand.u32 %s81, 1
          %s375 = smul.addr %s374, 16
          %s376 = scalar_lea.vmem [#allocation9], %s375
          %377 = dma.done %s373, 256
        $region48: #{tpu_custom_call.1} parent=43 // pred_fallthru
          _
      $region44: #{tpu_custom_call.1} parent=5 // pred_fallthru
        _
    $region6: #{tpu_custom_call.1} parent=1 // loop_footer
      %s24 = sadd.s32 1, %s20
    $region7: #{tpu_custom_call.1} parent=1 // loop_footer_branch
      %19 = sbr.rel target = $region3
    $region8: #{tpu_custom_call.1} parent=1 // loop_exit
      _
    %378 = vsyncpa [#allocation5], 1
    %s379 = scalar_lea.sflag [#allocation5], 1
    %380 = vsyncpa %s379, 1
    %381 = vsyncpa [#allocation8], 1
    %s382 = scalar_lea.sflag [#allocation8], 1
    %383 = vsyncpa %s382, 1
    %384 = vsyncpa [#allocation6], 1
    %s385 = scalar_lea.sflag [#allocation6], 1
    %386 = vsyncpa %s385, 1

</llo_original>
